<compile_context>
chip_gen: v7x
topology: tpu7x:2x2x1
jax: 0.10.0
libtpu: 0.0.40
codegen_flags: <defaults>
</compile_context>

<pallas_src>
import jax
import jax.numpy as jnp
from jax import lax
from jax.experimental import pallas as pl
from jax.experimental.pallas import tpu as pltpu


def _cosine_kernel(x_ref, w_ref, invw_ref, o_ref):
    # x_ref    : [B, D]        pre-normalized query rows (native dtype, resident)
    # w_ref    : [TC, D]       un-normalized class-vector tile (native dtype, streamed)
    # invw_ref : [1, TC]  f32  precomputed inverse row norms of W (lane layout)
    # o_ref    : [B, TC]  f32  cosine similarities
    dots = lax.dot_general(
        x_ref[...], w_ref[...],
        dimension_numbers=(((1,), (1,)), ((), ())),   # contract last dims, no .T
        preferred_element_type=jnp.float32,
    )                                                  # [B, TC]
    o_ref[...] = (dots * invw_ref[...]).astype(o_ref.dtype)


def _round_up(n, m):
    return -(-n // m) * m


def _vmem_capacity_bytes():
    try:
        return int(pltpu.get_tpu_info().vmem_capacity_bytes)
    except Exception:
        return 64 * 1024 * 1024  # conservative default (v7x-sized VMEM)


def _pick_tile_c(C, D, w_itemsize, vmem_cap):
    # Per-W-buffer budget ~ vmem/6 (double-buffered W is the dominant consumer):
    # ~21 MiB on 128 MiB VMEM (v5e/v6e), ~10.7 MiB on 64 MiB VMEM (v7x).
    budget = max(4 * 1024 * 1024, vmem_cap // 6)
    t = budget // max(1, D * w_itemsize)
    t = max(128, (t // 128) * 128)          # lane-dense output tile (multiple of 128)
    c_pad_128 = _round_up(C, 128)
    t = min(t, c_pad_128)
    # Guarantee >= 2 class tiles when possible so v7x's dual TensorCores both
    # get work under "parallel" sharding (neutral on single-TC v5e/v6e).
    if c_pad_128 >= 256:
        half = max(128, (c_pad_128 // 2 // 128) * 128)
        t = min(t, half)
    return int(t)


def make_cosine_classifier(class_vectors):
    """One-time setup (mirrors nn.Module init): pads W to a tile multiple and
    precomputes inv_w in f32.  Returns forward(x) -> [B, C] similarities."""
    C, D = class_vectors.shape
    eps2 = jnp.float32(1e-24)  # (F.normalize eps)^2, clamp on the sum of squares

    vmem_cap = _vmem_capacity_bytes()
    tile_c = _pick_tile_c(C, D, class_vectors.dtype.itemsize, vmem_cap)
    c_pad = _round_up(C, tile_c)

    w = class_vectors
    if c_pad != C:
        # Zero rows -> 0 dots -> 0 output (clamped sumsq keeps rsqrt finite).
        w = jnp.pad(class_vectors, ((0, c_pad - C), (0, 0)))

    # Precomputed f32 inverse row norms of W, already in lane layout [1, C_pad].
    w32 = w.astype(jnp.float32)
    inv_w = lax.rsqrt(
        jnp.maximum(jnp.sum(w32 * w32, axis=-1), eps2)
    ).reshape(1, c_pad)

    w = jax.block_until_ready(w)
    inv_w = jax.block_until_ready(inv_w)
    num_tiles = c_pad // tile_c
    w_itemsize = w.dtype.itemsize

    def forward(x):
        """x: [B, 1, D] (or [B, D]); returns cosine similarities [B, C] (f32)."""
        if x.ndim == 3:
            assert x.shape[1] == 1, "broadcast axis must be size 1"
            x2d = x.reshape(x.shape[0], x.shape[-1])
        else:
            x2d = x
        B, Dx = x2d.shape
        assert Dx == D

        # Pre-normalize x in plain XLA (tiny O(B*D) work), feed MXU native dtype.
        x32 = x2d.astype(jnp.float32)
        inv_x = lax.rsqrt(
            jnp.maximum(jnp.sum(x32 * x32, axis=-1, keepdims=True), eps2)
        )                                                   # [B, 1]
        xn = (x32 * inv_x).astype(x2d.dtype)                # [B, D]

        # Explicit VMEM budget covering every live buffer (double-buffered),
        # with 2x headroom, capped below physical VMEM.
        w_bytes = 2 * tile_c * D * w_itemsize
        invw_bytes = 2 * tile_c * 4
        x_bytes = 2 * B * D * xn.dtype.itemsize
        o_bytes = 2 * B * tile_c * 4
        total = w_bytes + invw_bytes + x_bytes + o_bytes
        vmem_limit = int(min(max(vmem_cap - (4 << 20), 16 << 20),
                             max(16 << 20, 2 * total)))

        out = pl.pallas_call(
            _cosine_kernel,
            out_shape=jax.ShapeDtypeStruct((B, c_pad), jnp.float32),
            grid_spec=pltpu.PrefetchScalarGridSpec(
                num_scalar_prefetch=0,
                grid=(num_tiles,),
                in_specs=[
                    pl.BlockSpec((B, D), lambda i: (0, 0)),          # x resident
                    pl.BlockSpec((tile_c, D), lambda i: (i, 0)),     # stream W tiles
                    pl.BlockSpec((1, tile_c), lambda i: (0, i)),     # inv_w per tile
                ],
                out_specs=pl.BlockSpec((B, tile_c), lambda i: (0, i)),
            ),
            compiler_params=pltpu.CompilerParams(
                dimension_semantics=("parallel",),   # class tiles are independent
                vmem_limit_bytes=vmem_limit,
            ),
        )(xn, w, inv_w)

        return out[:, :C] if c_pad != C else out

    return forward


def _reference(x, class_vectors):
    eps = 1e-12
    xn = x / jnp.maximum(jnp.linalg.norm(x, axis=-1, keepdims=True), eps)
    wn = class_vectors / jnp.maximum(
        jnp.linalg.norm(class_vectors, axis=1, keepdims=True), eps)
    return jnp.sum(xn * wn, axis=2)


if __name__ == "__main__":
    key = jax.random.PRNGKey(0)
    k1, k2 = jax.random.split(key)

    batch = 2
    num_classes = 8
    input_dim = 32

    class_vectors = jax.random.normal(k1, (num_classes, input_dim), jnp.float32)
    x = jax.random.normal(k2, (batch, 1, input_dim), jnp.float32)

    classifier = make_cosine_classifier(class_vectors)

    out = jax.block_until_ready(classifier(x))
    ref = _reference(x, class_vectors)
    assert out.shape == (batch, num_classes), out.shape
    assert jnp.allclose(out, ref, atol=1e-4, rtol=1e-4), (
        f"max err {jnp.max(jnp.abs(out - ref))}"
    )

    # Zero-vector edge case: F.normalize maps a zero row to zeros -> sims == 0.
    x_zero = jnp.zeros((1, 1, input_dim), jnp.float32)
    out_zero = jax.block_until_ready(classifier(x_zero))
    assert jnp.all(out_zero == 0.0), out_zero

    print("KERNEL_OK")
</pallas_src>

<mosaic_0001>
module attributes {stable_mosaic.version = 11 : i64} {
  func.func @_cosine_kernel(%arg0: i32, %arg1: memref<2x32xf32, #tpu.memory_space<vmem>>, %arg2: memref<128x32xf32, #tpu.memory_space<vmem>>, %arg3: memref<1x128xf32, #tpu.memory_space<vmem>>, %arg4: memref<2x128xf32, #tpu.memory_space<vmem>>) attributes {dimension_semantics = [#tpu.dimension_semantics<parallel>], iteration_bounds = array<i64: 1>, scalar_prefetch = 0 : i64, scratch_operands = 0 : i64, tpu.core_type = #tpu.core_type<tc>, window_params = [{pipeline_mode = #tpu.pipeline_mode<synchronous>, transform_indices = @transform_0, window_bounds = array<i64: 2, 32>}, {transform_indices = @transform_1, window_bounds = array<i64: 128, 32>}, {transform_indices = @transform_2, window_bounds = array<i64: 1, 128>}, {transform_indices = @transform_3, window_bounds = array<i64: 2, 128>}]} {
    %c0 = arith.constant 0 : index
    %c0_0 = arith.constant 0 : index
    %0 = vector.load %arg1[%c0, %c0_0] : memref<2x32xf32, #tpu.memory_space<vmem>>, vector<2x32xf32>
    %c0_1 = arith.constant 0 : index
    %c0_2 = arith.constant 0 : index
    %1 = vector.load %arg2[%c0_1, %c0_2] : memref<128x32xf32, #tpu.memory_space<vmem>>, vector<128x32xf32>
    %cst = arith.constant dense<0.000000e+00> : vector<2x128xf32>
    %2 = tpu.matmul %0, %1, %cst {dimension_numbers = #tpu.dot_dimension_numbers<[1], [1], [0], [0], [0, 0, 1, 0], [], []>} : vector<2x32xf32>, vector<128x32xf32>, vector<2x128xf32> -> vector<2x128xf32>
    %c0_3 = arith.constant 0 : index
    %c0_4 = arith.constant 0 : index
    %3 = vector.load %arg3[%c0_3, %c0_4] : memref<1x128xf32, #tpu.memory_space<vmem>>, vector<1x128xf32>
    %4 = vector.broadcast %3 : vector<1x128xf32> to vector<2x128xf32>
    %5 = arith.mulf %2, %4 : vector<2x128xf32>
    %c0_5 = arith.constant 0 : index
    %c0_6 = arith.constant 0 : index
    %6 = vector.load %arg4[%c0_5, %c0_6] : memref<2x128xf32, #tpu.memory_space<vmem>>, vector<2x128xf32>
    tpu.vector_store %arg4[%c0_5, %c0_6], %5 {strides = array<i32>} : memref<2x128xf32, #tpu.memory_space<vmem>>, vector<2x128xf32>,
    return
  }
  func.func @transform_0(%arg0: i32) -> (i32, i32) {
    %c0_i32 = arith.constant 0 : i32
    %c0_i32_0 = arith.constant 0 : i32
    %c0_i32_1 = arith.constant 0 : i32
    return %c0_i32, %c0_i32_0 : i32, i32
  }
  func.func @transform_1(%arg0: i32) -> (i32, i32) {
    %c0_i32 = arith.constant 0 : i32
    %c0_i32_0 = arith.constant 0 : i32
    return %arg0, %c0_i32 : i32, i32
  }
  func.func @transform_2(%arg0: i32) -> (i32, i32) {
    %c0_i32 = arith.constant 0 : i32
    %c0_i32_0 = arith.constant 0 : i32
    return %c0_i32, %arg0 : i32, i32
  }
  func.func @transform_3(%arg0: i32) -> (i32, i32) {
    %c0_i32 = arith.constant 0 : i32
    %c0_i32_0 = arith.constant 0 : i32
    return %c0_i32, %arg0 : i32, i32
  }
}

</mosaic_0001>

<llo_original>
// kernel: tpu_custom_call.1
$region0: #{tpu_custom_call.1}
  #allocation0 [shape = 'u32[]', space=smem, size = 0x4, offset = 0x4, fixed_abs, tag = 'smem constant byte address 0x4 - core index']
  #allocation1 [shape = 'u32[144,128]{1,0:T(1,128)}', space=vmem, size = 0x12000, scoped, tag = 'internal scratch']
  %s0 = inlined_call_operand.vmem [shape: f32[2,32], index: 0, kind: input, shape index: {}]
  %s1 = inlined_call_operand.vmem [shape: f32[128,32], index: 1, kind: input, shape index: {}]
  %s2 = inlined_call_operand.vmem [shape: f32[1,128], index: 2, kind: input, shape index: {}]
  %s3 = inlined_call_operand.hbm [shape: f32[2,128], index: 3, kind: output, shape index: {}]
  %s4 = sld [smem:[#allocation0]]
  $region22: #{tpu_custom_call.1} parent=0
    _
  %s6 = ssub.s32 1, %s4
  %s7 = scalar_select 0, %s6, %s4
  $region1: #{tpu_custom_call.1} parent=0
    #allocation2 [shape = 'u8[1024]{0}', space=vmem, size = 0x400, scoped, tag = 'output window, operand 0, single buffered']
    #allocation3 [shape = 's32[1]{0}', space=sflag, size = 0x4, scoped, tag = 'scoped memory for tpu_custom_call.1']
    %8 = vsyncpa [#allocation3], 0
    // Predicated region
    $region2: #{tpu_custom_call.1} parent=1 // pred_check
      _
    $region3: #{tpu_custom_call.1} parent=1 // pred_check_branch
      %10 = sbr.rel (0) target = $region5
    $region4: #{tpu_custom_call.1} parent=1 // pred_region
      _
    $region5: #{tpu_custom_call.1} parent=1 // pred_fallthru
      _
    // Predicated region
    $region6: #{tpu_custom_call.1} parent=1 // pred_check
      _
    $region7: #{tpu_custom_call.1} parent=1 // pred_check_branch
      %12 = sbr.rel (0) target = $region9
    $region8: #{tpu_custom_call.1} parent=1 // pred_region
      _
    $region9: #{tpu_custom_call.1} parent=1 // pred_fallthru
      _
    // Predicated region
    $region10: #{tpu_custom_call.1} parent=1 // pred_check
      _
    $region11: #{tpu_custom_call.1} parent=1 // pred_check_branch
      %14 = sbr.rel (0) target = $region13
    $region12: #{tpu_custom_call.1} parent=1 // pred_region
      _
    $region13: #{tpu_custom_call.1} parent=1 // pred_fallthru
      _
    %v15 = vld [vmem:[%s0] sm:$0x3]
    %v16 = vld [vmem:[%s1] sm:$0xff]
    %v17 = vld [vmem:[%s1 + $0x8] sm:$0xff]
    %v18 = vld [vmem:[%s1 + $0x10] sm:$0xff]
    %v19 = vld [vmem:[%s1 + $0x18] sm:$0xff]
    %v20 = vld [vmem:[%s1 + $0x20] sm:$0xff]
    %v21 = vld [vmem:[%s1 + $0x28] sm:$0xff]
    %v22 = vld [vmem:[%s1 + $0x30] sm:$0xff]
    %v23 = vld [vmem:[%s1 + $0x38] sm:$0xff]
    %v24 = vld [vmem:[%s1 + $0x40] sm:$0xff]
    %v25 = vld [vmem:[%s1 + $0x48] sm:$0xff]
    %v26 = vld [vmem:[%s1 + $0x50] sm:$0xff]
    %v27 = vld [vmem:[%s1 + $0x58] sm:$0xff]
    %v28 = vld [vmem:[%s1 + $0x60] sm:$0xff]
    %v29 = vld [vmem:[%s1 + $0x68] sm:$0xff]
    %v30 = vld [vmem:[%s1 + $0x70] sm:$0xff]
    %v31 = vld [vmem:[%s1 + $0x78] sm:$0xff]
    %vm32 = vcmask 261120
    %v34 = vsel %vm32, %v15, 0
    %v37 = vsel %vm32, %v16, 0
    %v40 = vsel %vm32, %v17, 0
    %v43 = vsel %vm32, %v18, 0
    %v46 = vsel %vm32, %v19, 0
    %v49 = vsel %vm32, %v20, 0
    %v52 = vsel %vm32, %v21, 0
    %v55 = vsel %vm32, %v22, 0
    %v58 = vsel %vm32, %v23, 0
    %v61 = vsel %vm32, %v24, 0
    %v64 = vsel %vm32, %v25, 0
    %v67 = vsel %vm32, %v26, 0
    %v70 = vsel %vm32, %v27, 0
    %v73 = vsel %vm32, %v28, 0
    %v76 = vsel %vm32, %v29, 0
    %v79 = vsel %vm32, %v30, 0
    %v82 = vsel %vm32, %v31, 0
    %84 = vmatprep.subr.mxu0 0.0
    %85 = vmatpush1.xpose.msra.mxu0 %v37
    %86 = vmatprep.subr.mxu0 0.0
    %87 = vmatpush1.xpose.msra.mxu0 %v40
    %88 = vmatprep.subr.mxu0 0.0
    %89 = vmatpush1.xpose.msra.mxu0 %v43
    %90 = vmatprep.subr.mxu0 0.0
    %91 = vmatpush1.xpose.msra.mxu0 %v46
    %92 = vmatprep.subr.mxu0 0.0
    %93 = vmatpush1.xpose.msra.mxu0 %v49
    %94 = vmatprep.subr.mxu0 0.0
    %95 = vmatpush1.xpose.msra.mxu0 %v52
    %96 = vmatprep.subr.mxu0 0.0
    %97 = vmatpush1.xpose.msra.mxu0 %v55
    %98 = vmatprep.subr.mxu0 0.0
    %99 = vmatpush1.xpose.msra.mxu0 %v58
    %100 = vmatprep.subr.mxu0 0.0
    %101 = vmatpush1.xpose.msra.mxu0 %v61
    %102 = vmatprep.subr.mxu0 0.0
    %103 = vmatpush1.xpose.msra.mxu0 %v64
    %104 = vmatprep.subr.mxu0 0.0
    %105 = vmatpush1.xpose.msra.mxu0 %v67
    %106 = vmatprep.subr.mxu0 0.0
    %107 = vmatpush1.xpose.msra.mxu0 %v70
    %108 = vmatprep.subr.mxu0 0.0
    %109 = vmatpush1.xpose.msra.mxu0 %v73
    %110 = vmatprep.subr.mxu0 0.0
    %111 = vmatpush1.xpose.msra.mxu0 %v76
    %112 = vmatprep.subr.mxu0 0.0
    %113 = vmatpush1.xpose.msra.mxu0 %v79
    %114 = vmatprep.subr.mxu0 0.0
    %115 = vmatpush1.xpose.msra.mxu0 %v82
    %116 = vmatprep.subr.mxu0 0.0
    %117 = vmatpush1.xpose.msra.mxu0 0.0
    %118 = vmatprep.subr.mxu0 0.0
    %119 = vmatpush1.xpose.msra.mxu0 0.0
    %120 = vmatprep.subr.mxu0 0.0
    %121 = vmatpush1.xpose.msra.mxu0 0.0
    %122 = vmatprep.subr.mxu0 0.0
    %123 = vmatpush1.xpose.msra.mxu0 0.0
    %124 = vmatprep.subr.mxu0 0.0
    %125 = vmatpush1.xpose.msra.mxu0 0.0
    %126 = vmatprep.subr.mxu0 0.0
    %127 = vmatpush1.xpose.msra.mxu0 0.0
    %128 = vmatprep.subr.mxu0 0.0
    %129 = vmatpush1.xpose.msra.mxu0 0.0
    %130 = vmatprep.subr.mxu0 0.0
    %131 = vmatpush1.xpose.msra.mxu0 0.0
    %132 = vmatprep.subr.mxu0 0.0
    %133 = vmatpush1.xpose.msra.mxu0 0.0
    %134 = vmatprep.subr.mxu0 0.0
    %135 = vmatpush1.xpose.msra.mxu0 0.0
    %136 = vmatprep.subr.mxu0 0.0
    %137 = vmatpush1.xpose.msra.mxu0 0.0
    %138 = vmatprep.subr.mxu0 0.0
    %139 = vmatpush1.xpose.msra.mxu0 0.0
    %140 = vmatprep.subr.mxu0 0.0
    %141 = vmatpush1.xpose.msra.mxu0 0.0
    %142 = vmatprep.subr.mxu0 0.0
    %143 = vmatpush1.xpose.msra.mxu0 0.0
    %144 = vmatprep.subr.mxu0 0.0
    %145 = vmatpush1.xpose.msra.mxu0 0.0
    %146 = vmatprep.subr.mxu0 0.0
    %147 = vmatpush1.xpose.msra.mxu0 0.0
    %148 = vmatprep.mubr.f32.mxu0 0.0
    %149 = vmatmul.mubr.f32.gmra.mrb[0].mxu0 %v34
    %v150 = vpop.f32.mrb[0].mxu0
    %v151 = vadd.f32 0.0, %v150
    %v152 = vpop.f32.mrb[0].mxu0
    %153 = vdwg.mxu0
    %v154 = vld [vmem:[%s2] sm:$0x1]
    %v156 = vlaneseq
    %v157 = vshrl.u32 %v156, 7
    %v158 = vsub.s32 0, %v157
    %v159 = vrot.slane %v154, %v158
    %v161 = vmul.f32 %v151, %v159
    %162 = vst [vmem:[#allocation2] sm:$0x3] %v161
    // Predicated region
    $region14: #{tpu_custom_call.1} parent=1 // pred_check
      _
    $region15: #{tpu_custom_call.1} parent=1 // pred_check_branch
      %164 = sbr.rel (0) target = $region17
    $region16: #{tpu_custom_call.1} parent=1 // pred_region
      %s166 = ssub.s32 32, 32
      %167 = vsyncadd [#allocation3], %s166
      %s169 = sshll.u32 [#allocation2], 4
      %s170 = int_to_ptr.vmem [resolvable:$true] %s169
      %172 = dma.vmem_to_hbm [thread:$0]  %s170, 32, %s3, [#allocation3]
    $region17: #{tpu_custom_call.1} parent=1 // pred_fallthru
      _
    // Predicated region
    $region18: #{tpu_custom_call.1} parent=1 // pred_check
      _
    $region19: #{tpu_custom_call.1} parent=1 // pred_check_branch
      %174 = sbr.rel (0) target = $region21
    $region20: #{tpu_custom_call.1} parent=1 // pred_region
      %175 = dma.done [#allocation3], 32
    $region21: #{tpu_custom_call.1} parent=1 // pred_fallthru
      _
    %176 = vsyncpa [#allocation3], 1

</llo_original>
